<compile_context>
chip_gen: v7x
topology: tpu7x:2x2x1
jax: 0.10.0
libtpu: 0.0.40
codegen_flags: <defaults>
</compile_context>

<pallas_src>
import functools

import jax
import jax.numpy as jnp
from jax.experimental import pallas as pl
from jax.experimental.pallas import tpu as pltpu

SUBLANE = 8  # TPU vreg sublane width (second-to-last dim granularity)


def _round_up(n: int, m: int) -> int:
    return (n + m - 1) // m * m


def _default_act_dtype():
    """bf16 inter-layer epilogue on v6e/v7x (native bf16 VPU), f32 on v5e and older."""
    try:
        kind = jax.devices()[0].device_kind.lower()
    except Exception:  # pragma: no cover - defensive
        kind = ""
    if "v6" in kind or "v7" in kind:
        return jnp.bfloat16
    return jnp.float32


def prepare_params(params):
    """One-time parameter prep (do NOT redo per forward call).

    Casts weights to bf16 (MXU-native) and biases to f32 with shape (1, d_out) so the
    per-call forward does zero weight casting / padding HBM traffic."""
    prepared = []
    for w, b in params:
        prepared.append((jnp.asarray(w, jnp.bfloat16),
                         jnp.asarray(b, jnp.float32).reshape(1, -1)))
    return prepared


def _mlp_fused_kernel(*refs, n_layers: int, act_dtype):
    """Fused MLP on one batch tile: h = x; h = [relu](h @ W_l + b_l) for each layer.

    refs = (x_ref, w0_ref, b0_ref, w1_ref, b1_ref, ..., o_ref)
      x_ref : (tm, d_in)         input dtype (real, unpadded feature width)
      w_ref : (d_l, d_{l+1})     bf16  (MXU-native), VMEM-resident across batch tiles
      b_ref : (1,   d_{l+1})     f32
      o_ref : (tm, d_out)        input dtype (real, unpadded feature width)
    Hidden activations live entirely in vregs/VMEM temporaries (never hit HBM).
    """
    x_ref = refs[0]
    o_ref = refs[-1]
    wb = refs[1:-1]

    h = x_ref[...]
    for li in range(n_layers):
        w = wb[2 * li][...]        # bf16
        b = wb[2 * li + 1][...]    # f32, broadcast (1, D) over rows
        y = jnp.dot(h.astype(jnp.bfloat16), w, preferred_element_type=jnp.float32)
        y = y + b                  # f32 bias add
        if li < n_layers - 1:
            # ReLU between layers; keep activation in act_dtype (bf16 on v6e/v7x, f32 on v5e).
            y = jnp.maximum(y, 0.0).astype(act_dtype)
        h = y
    o_ref[...] = h.astype(o_ref.dtype)


@functools.partial(jax.jit, static_argnames=("block_batch",))
def base_network_forward(x, params, *, block_batch: int = 512):
    """Equivalent of BaseNetwork.forward: sequentially apply all layers, fused into a single
    Pallas kernel with VMEM-resident weights and VMEM/vreg-resident activations.

    `params` must come from prepare_params() (bf16 weights [in,out], f32 biases [1,out])."""
    n_layers = len(params)
    batch, d_in = x.shape
    d_out = params[-1][0].shape[1]
    act_dtype = _default_act_dtype()

    # Balanced batch tiles: pad at most SUBLANE-1 rows per tile, and keep >= 2 grid steps
    # when the batch allows so v7x's two TensorCores both get work ("parallel" axis).
    n_tiles = max(1, -(-batch // block_batch))
    if n_tiles == 1 and batch >= 2 * SUBLANE:
        n_tiles = 2
    tm = _round_up(-(-batch // n_tiles), SUBLANE)
    batch_p = n_tiles * tm

    # Only row padding (cheap, and only when batch % tm != 0); feature widths stay unpadded.
    x_in = x if batch_p == batch else jnp.pad(x, ((0, batch_p - batch), (0, 0)))

    flat_inputs = [x_in]
    in_specs = [pl.BlockSpec((tm, d_in), lambda i: (i, 0))]
    for w, b in params:
        flat_inputs += [w, b]
        # Full-array blocks with a constant index_map: fetched once, VMEM-resident across all
        # batch tiles.  Single-buffered (Buffered(1)): double-buffering resident data wastes VMEM.
        in_specs += [
            pl.BlockSpec(w.shape, lambda i: (0, 0), pipeline_mode=pl.Buffered(1)),
            pl.BlockSpec(b.shape, lambda i: (0, 0), pipeline_mode=pl.Buffered(1)),
        ]

    # Explicit VMEM budget: resident weights/biases + double-buffered in/out tiles +
    # activation temporaries, with 2x headroom, clamped to what every generation can grant.
    itemsize = x.dtype.itemsize
    weight_bytes = sum(int(w.size) * w.dtype.itemsize + int(b.size) * b.dtype.itemsize
                       for w, b in params)
    max_d = max([d_in, d_out] + [w.shape[1] for w, _ in params])
    io_bytes = 2 * tm * d_in * itemsize + 2 * tm * d_out * itemsize
    act_bytes = 4 * tm * max_d * 4
    vmem_limit = int(min(64 << 20, max(16 << 20, 2 * (weight_bytes + io_bytes + act_bytes))))

    kernel = functools.partial(_mlp_fused_kernel, n_layers=n_layers, act_dtype=act_dtype)
    out = pl.pallas_call(
        kernel,
        out_shape=jax.ShapeDtypeStruct((batch_p, d_out), x.dtype),
        grid_spec=pltpu.PrefetchScalarGridSpec(
            num_scalar_prefetch=0,
            grid=(n_tiles,),
            in_specs=in_specs,
            out_specs=pl.BlockSpec((tm, d_out), lambda i: (i, 0)),
        ),
        compiler_params=pltpu.CompilerParams(
            # Batch tiles are independent -> shard across TensorCores (v7x megacore).
            dimension_semantics=("parallel",),
            vmem_limit_bytes=vmem_limit,
        ),
    )(*flat_inputs)

    return out if batch_p == batch else out[:batch]


def init_params(key, layer_dims):
    """Deterministic init mimicking torch.nn.Linear default (uniform +/- 1/sqrt(fan_in)).

    Weights stored as [in_features, out_features] so the kernel computes x @ W + b
    (equivalent to torch's x @ W_t.T + b)."""
    params = []
    for d_in, d_out in zip(layer_dims[:-1], layer_dims[1:]):
        key, kw, kb = jax.random.split(key, 3)
        bound = 1.0 / jnp.sqrt(jnp.float32(d_in))
        w = jax.random.uniform(kw, (d_in, d_out), jnp.float32, -bound, bound)
        b = jax.random.uniform(kb, (d_out,), jnp.float32, -bound, bound)
        params.append((w, b))
    return params


if __name__ == "__main__":
    key = jax.random.PRNGKey(0)
    key, kx = jax.random.split(key)

    batch, d_in, hidden, d_out = 8, 32, 32, 32  # small shapes consistent with the module
    x = jax.random.normal(kx, (batch, d_in), jnp.float32)
    raw_params = init_params(key, [d_in, hidden, hidden, d_out])
    params = prepare_params(raw_params)          # one-time bf16/f32 prep (not per forward)

    out = base_network_forward(x, params)
    out = jax.block_until_ready(out)
    assert out.shape == (batch, d_out)

    # Reference mirroring the kernel's exact dtype recipe (bf16 matmul, f32 acc, per-gen
    # activation dtype between layers).
    act_dtype = _default_act_dtype()
    ref = x
    for i, (w, b) in enumerate(params):
        y = jnp.dot(ref.astype(jnp.bfloat16), w, preferred_element_type=jnp.float32) + b[0]
        if i < len(params) - 1:
            y = jnp.maximum(y, 0.0).astype(act_dtype)
        ref = y
    ref = ref.astype(x.dtype)
    assert jnp.allclose(out, ref, atol=2e-3, rtol=2e-3), "mismatch vs dtype-matched reference"

    # Loose sanity check vs pure-f32 torch-Linear semantics (bf16 matmul rounding expected).
    ref_f32 = x
    for i, (w, b) in enumerate(raw_params):
        ref_f32 = ref_f32 @ w + b
        if i < len(raw_params) - 1:
            ref_f32 = jnp.maximum(ref_f32, 0.0)
    assert jnp.allclose(out, ref_f32, atol=5e-2, rtol=5e-2), "mismatch vs f32 reference"

    print("KERNEL_OK")
</pallas_src>

<mosaic_0001>
module attributes {stable_mosaic.version = 11 : i64} {
  func.func @_mlp_fused_kernel(%arg0: i32, %arg1: memref<8x32xf32, #tpu.memory_space<vmem>>, %arg2: memref<32x32xbf16, #tpu.memory_space<vmem>>, %arg3: memref<1x32xf32, #tpu.memory_space<vmem>>, %arg4: memref<32x32xbf16, #tpu.memory_space<vmem>>, %arg5: memref<1x32xf32, #tpu.memory_space<vmem>>, %arg6: memref<32x32xbf16, #tpu.memory_space<vmem>>, %arg7: memref<1x32xf32, #tpu.memory_space<vmem>>, %arg8: memref<8x32xf32, #tpu.memory_space<vmem>>) attributes {dimension_semantics = [#tpu.dimension_semantics<parallel>], iteration_bounds = array<i64: 1>, scalar_prefetch = 0 : i64, scratch_operands = 0 : i64, tpu.core_type = #tpu.core_type<tc>, window_params = [{transform_indices = @transform_0, window_bounds = array<i64: 8, 32>}, {pipeline_mode = #tpu.pipeline_mode<synchronous>, transform_indices = @transform_1, window_bounds = array<i64: 32, 32>}, {pipeline_mode = #tpu.pipeline_mode<synchronous>, transform_indices = @transform_2, window_bounds = array<i64: 1, 32>}, {pipeline_mode = #tpu.pipeline_mode<synchronous>, transform_indices = @transform_3, window_bounds = array<i64: 32, 32>}, {pipeline_mode = #tpu.pipeline_mode<synchronous>, transform_indices = @transform_4, window_bounds = array<i64: 1, 32>}, {pipeline_mode = #tpu.pipeline_mode<synchronous>, transform_indices = @transform_5, window_bounds = array<i64: 32, 32>}, {pipeline_mode = #tpu.pipeline_mode<synchronous>, transform_indices = @transform_6, window_bounds = array<i64: 1, 32>}, {transform_indices = @transform_7, window_bounds = array<i64: 8, 32>}]} {
    %c0 = arith.constant 0 : index
    %c0_0 = arith.constant 0 : index
    %0 = vector.load %arg1[%c0, %c0_0] : memref<8x32xf32, #tpu.memory_space<vmem>>, vector<8x32xf32>
    %c0_1 = arith.constant 0 : index
    %c0_2 = arith.constant 0 : index
    %1 = vector.load %arg2[%c0_1, %c0_2] : memref<32x32xbf16, #tpu.memory_space<vmem>>, vector<32x32xbf16>
    %c0_3 = arith.constant 0 : index
    %c0_4 = arith.constant 0 : index
    %2 = vector.load %arg3[%c0_3, %c0_4] : memref<1x32xf32, #tpu.memory_space<vmem>>, vector<1x32xf32>
    %3 = arith.truncf %0 : vector<8x32xf32> to vector<8x32xbf16>
    %cst = arith.constant dense<0.000000e+00> : vector<8x32xf32>
    %4 = tpu.matmul %3, %1, %cst {dimension_numbers = #tpu.dot_dimension_numbers<[1], [0], [0], [1], [0, 0, 1, 1], [], []>} : vector<8x32xbf16>, vector<32x32xbf16>, vector<8x32xf32> -> vector<8x32xf32>
    %5 = vector.broadcast %2 : vector<1x32xf32> to vector<8x32xf32>
    %6 = arith.addf %4, %5 : vector<8x32xf32>
    %cst_5 = arith.constant 0.000000e+00 : f32
    %7 = vector.broadcast %cst_5 : f32 to vector<8x32xf32>
    %8 = arith.maximumf %6, %7 : vector<8x32xf32>
    %c0_6 = arith.constant 0 : index
    %c0_7 = arith.constant 0 : index
    %9 = vector.load %arg4[%c0_6, %c0_7] : memref<32x32xbf16, #tpu.memory_space<vmem>>, vector<32x32xbf16>
    %c0_8 = arith.constant 0 : index
    %c0_9 = arith.constant 0 : index
    %10 = vector.load %arg5[%c0_8, %c0_9] : memref<1x32xf32, #tpu.memory_space<vmem>>, vector<1x32xf32>
    %11 = arith.truncf %8 : vector<8x32xf32> to vector<8x32xbf16>
    %cst_10 = arith.constant dense<0.000000e+00> : vector<8x32xf32>
    %12 = tpu.matmul %11, %9, %cst_10 {dimension_numbers = #tpu.dot_dimension_numbers<[1], [0], [0], [1], [0, 0, 1, 1], [], []>} : vector<8x32xbf16>, vector<32x32xbf16>, vector<8x32xf32> -> vector<8x32xf32>
    %13 = vector.broadcast %10 : vector<1x32xf32> to vector<8x32xf32>
    %14 = arith.addf %12, %13 : vector<8x32xf32>
    %cst_11 = arith.constant 0.000000e+00 : f32
    %15 = vector.broadcast %cst_11 : f32 to vector<8x32xf32>
    %16 = arith.maximumf %14, %15 : vector<8x32xf32>
    %c0_12 = arith.constant 0 : index
    %c0_13 = arith.constant 0 : index
    %17 = vector.load %arg6[%c0_12, %c0_13] : memref<32x32xbf16, #tpu.memory_space<vmem>>, vector<32x32xbf16>
    %c0_14 = arith.constant 0 : index
    %c0_15 = arith.constant 0 : index
    %18 = vector.load %arg7[%c0_14, %c0_15] : memref<1x32xf32, #tpu.memory_space<vmem>>, vector<1x32xf32>
    %19 = arith.truncf %16 : vector<8x32xf32> to vector<8x32xbf16>
    %cst_16 = arith.constant dense<0.000000e+00> : vector<8x32xf32>
    %20 = tpu.matmul %19, %17, %cst_16 {dimension_numbers = #tpu.dot_dimension_numbers<[1], [0], [0], [1], [0, 0, 1, 1], [], []>} : vector<8x32xbf16>, vector<32x32xbf16>, vector<8x32xf32> -> vector<8x32xf32>
    %21 = vector.broadcast %18 : vector<1x32xf32> to vector<8x32xf32>
    %22 = arith.addf %20, %21 : vector<8x32xf32>
    %c0_17 = arith.constant 0 : index
    %c0_18 = arith.constant 0 : index
    %23 = vector.load %arg8[%c0_17, %c0_18] : memref<8x32xf32, #tpu.memory_space<vmem>>, vector<8x32xf32>
    tpu.vector_store %arg8[%c0_17, %c0_18], %22 {strides = array<i32>} : memref<8x32xf32, #tpu.memory_space<vmem>>, vector<8x32xf32>,
    return
  }
  func.func @transform_0(%arg0: i32) -> (i32, i32) {
    %c0_i32 = arith.constant 0 : i32
    %c0_i32_0 = arith.constant 0 : i32
    return %arg0, %c0_i32 : i32, i32
  }
  func.func @transform_1(%arg0: i32) -> (i32, i32) {
    %c0_i32 = arith.constant 0 : i32
    %c0_i32_0 = arith.constant 0 : i32
    %c0_i32_1 = arith.constant 0 : i32
    return %c0_i32, %c0_i32_0 : i32, i32
  }
  func.func @transform_2(%arg0: i32) -> (i32, i32) {
    %c0_i32 = arith.constant 0 : i32
    %c0_i32_0 = arith.constant 0 : i32
    %c0_i32_1 = arith.constant 0 : i32
    return %c0_i32, %c0_i32_0 : i32, i32
  }
  func.func @transform_3(%arg0: i32) -> (i32, i32) {
    %c0_i32 = arith.constant 0 : i32
    %c0_i32_0 = arith.constant 0 : i32
    %c0_i32_1 = arith.constant 0 : i32
    return %c0_i32, %c0_i32_0 : i32, i32
  }
  func.func @transform_4(%arg0: i32) -> (i32, i32) {
    %c0_i32 = arith.constant 0 : i32
    %c0_i32_0 = arith.constant 0 : i32
    %c0_i32_1 = arith.constant 0 : i32
    return %c0_i32, %c0_i32_0 : i32, i32
  }
  func.func @transform_5(%arg0: i32) -> (i32, i32) {
    %c0_i32 = arith.constant 0 : i32
    %c0_i32_0 = arith.constant 0 : i32
    %c0_i32_1 = arith.constant 0 : i32
    return %c0_i32, %c0_i32_0 : i32, i32
  }
  func.func @transform_6(%arg0: i32) -> (i32, i32) {
    %c0_i32 = arith.constant 0 : i32
    %c0_i32_0 = arith.constant 0 : i32
    %c0_i32_1 = arith.constant 0 : i32
    return %c0_i32, %c0_i32_0 : i32, i32
  }
  func.func @transform_7(%arg0: i32) -> (i32, i32) {
    %c0_i32 = arith.constant 0 : i32
    %c0_i32_0 = arith.constant 0 : i32
    return %arg0, %c0_i32 : i32, i32
  }
}

</mosaic_0001>

<llo_original>
// kernel: base_network_forward.1
$region0: #{base_network_forward.1}
  #allocation0 [shape = 'u32[]', space=smem, size = 0x4, offset = 0x4, fixed_abs, tag = 'smem constant byte address 0x4 - core index']
  #allocation1 [shape = 'u32[144,128]{1,0:T(1,128)}', space=vmem, size = 0x12000, scoped, tag = 'internal scratch']
  %s0 = inlined_call_operand.hbm [shape: f32[8,32], index: 0, kind: input, shape index: {}]
  %s1 = inlined_call_operand.hbm [shape: bf16[32,32], index: 1, kind: input, shape index: {}]
  %s2 = inlined_call_operand.vmem [shape: f32[1,32], index: 2, kind: input, shape index: {}]
  %s3 = inlined_call_operand.hbm [shape: bf16[32,32], index: 3, kind: input, shape index: {}]
  %s4 = inlined_call_operand.vmem [shape: f32[1,32], index: 4, kind: input, shape index: {}]
  %s5 = inlined_call_operand.vmem [shape: bf16[32,32], index: 5, kind: input, shape index: {}]
  %s6 = inlined_call_operand.vmem [shape: f32[1,32], index: 6, kind: input, shape index: {}]
  %s7 = inlined_call_operand.hbm [shape: f32[8,32], index: 7, kind: output, shape index: {}]
  %s8 = sld [smem:[#allocation0]]
  $region50: #{base_network_forward.1} parent=0
    _
  %s10 = ssub.s32 1, %s8
  %s11 = scalar_select 0, %s10, %s8
  $region1: #{base_network_forward.1} parent=0
    #allocation2 [shape = 'u8[4096]{0}', space=vmem, size = 0x1000, scoped, tag = 'input window, operand 0, single buffered']
    #allocation3 [shape = 's32[1]{0}', space=sflag, size = 0x4, scoped, tag = 'scoped memory for base_network_forward.1']
    #allocation4 [shape = 's32[1]{0}', space=sflag, size = 0x4, scoped, tag = 'scoped memory for base_network_forward.1']
    #allocation5 [shape = 'u8[8192]{0}', space=vmem, size = 0x2000, scoped, tag = 'input window, operand 1, single buffered']
    #allocation6 [shape = 's32[1]{0}', space=sflag, size = 0x4, scoped, tag = 'scoped memory for base_network_forward.1']
    #allocation7 [shape = 'u8[8192]{0}', space=vmem, size = 0x2000, scoped, tag = 'input window, operand 3, single buffered']
    #allocation8 [shape = 'u8[4096]{0}', space=vmem, size = 0x1000, scoped, tag = 'output window, operand 0, single buffered']
    %12 = vsyncpa [#allocation3], 0
    %13 = vsyncpa [#allocation6], 0
    %14 = vsyncpa [#allocation4], 0
    // Predicated region
    $region2: #{base_network_forward.1} parent=1 // pred_check
      _
    $region3: #{base_network_forward.1} parent=1 // pred_check_branch
      %16 = sbr.rel (0) target = $region5
    $region4: #{base_network_forward.1} parent=1 // pred_region
      %s18 = ssub.s32 128, 128
      %19 = vsyncadd [#allocation3], %s18
      %s21 = sshll.u32 [#allocation2], 4
      %s22 = int_to_ptr.vmem [resolvable:$true] %s21
      %24 = dma.hbm_to_vmem [thread:$0]  %s0, 128, %s22, [#allocation3]
    $region5: #{base_network_forward.1} parent=1 // pred_fallthru
      _
    // Predicated region
    $region6: #{base_network_forward.1} parent=1 // pred_check
      _
    $region7: #{base_network_forward.1} parent=1 // pred_check_branch
      %26 = sbr.rel (0) target = $region9
    $region8: #{base_network_forward.1} parent=1 // pred_region
      %s28 = ssub.s32 256, 256
      %29 = vsyncadd [#allocation6], %s28
      %s30 = sshll.u32 [#allocation5], 4
      %s31 = int_to_ptr.vmem [resolvable:$true] %s30
      %36 = dma.hbm_to_vmem [thread:$0]  %s1, 256, %s31, [#allocation6], 64, 64, 4
    $region9: #{base_network_forward.1} parent=1 // pred_fallthru
      _
    // Predicated region
    $region10: #{base_network_forward.1} parent=1 // pred_check
      _
    $region11: #{base_network_forward.1} parent=1 // pred_check_branch
      %38 = sbr.rel (0) target = $region13
    $region12: #{base_network_forward.1} parent=1 // pred_region
      _
    $region13: #{base_network_forward.1} parent=1 // pred_fallthru
      _
    // Predicated region
    $region14: #{base_network_forward.1} parent=1 // pred_check
      _
    $region15: #{base_network_forward.1} parent=1 // pred_check_branch
      %40 = sbr.rel (0) target = $region17
    $region16: #{base_network_forward.1} parent=1 // pred_region
      %s42 = ssub.s32 256, 256
      %43 = vsyncadd [#allocation6], %s42
      %s44 = sshll.u32 [#allocation7], 4
      %s45 = int_to_ptr.vmem [resolvable:$true] %s44
      %50 = dma.hbm_to_vmem [thread:$0]  %s3, 256, %s45, [#allocation6], 64, 64, 4
    $region17: #{base_network_forward.1} parent=1 // pred_fallthru
      _
    // Predicated region
    $region18: #{base_network_forward.1} parent=1 // pred_check
      _
    $region19: #{base_network_forward.1} parent=1 // pred_check_branch
      %52 = sbr.rel (0) target = $region21
    $region20: #{base_network_forward.1} parent=1 // pred_region
      _
    $region21: #{base_network_forward.1} parent=1 // pred_fallthru
      _
    // Predicated region
    $region22: #{base_network_forward.1} parent=1 // pred_check
      _
    $region23: #{base_network_forward.1} parent=1 // pred_check_branch
      %54 = sbr.rel (0) target = $region25
    $region24: #{base_network_forward.1} parent=1 // pred_region
      _
    $region25: #{base_network_forward.1} parent=1 // pred_fallthru
      _
    // Predicated region
    $region26: #{base_network_forward.1} parent=1 // pred_check
      _
    $region27: #{base_network_forward.1} parent=1 // pred_check_branch
      %56 = sbr.rel (0) target = $region29
    $region28: #{base_network_forward.1} parent=1 // pred_region
      _
    $region29: #{base_network_forward.1} parent=1 // pred_fallthru
      _
    // Predicated region
    $region30: #{base_network_forward.1} parent=1 // pred_check
      _
    $region31: #{base_network_forward.1} parent=1 // pred_check_branch
      %58 = sbr.rel (0) target = $region33
    $region32: #{base_network_forward.1} parent=1 // pred_region
      %59 = dma.done [#allocation3], 128
    $region33: #{base_network_forward.1} parent=1 // pred_fallthru
      _
    // Predicated region
    $region34: #{base_network_forward.1} parent=1 // pred_check
      _
    $region35: #{base_network_forward.1} parent=1 // pred_check_branch
      %61 = sbr.rel (0) target = $region37
    $region36: #{base_network_forward.1} parent=1 // pred_region
      %62 = dma.done [#allocation6], 256
    $region37: #{base_network_forward.1} parent=1 // pred_fallthru
      _
    // Predicated region
    $region38: #{base_network_forward.1} parent=1 // pred_check
      _
    $region39: #{base_network_forward.1} parent=1 // pred_check_branch
      %64 = sbr.rel (0) target = $region41
    $region40: #{base_network_forward.1} parent=1 // pred_region
      %65 = dma.done [#allocation6], 256
    $region41: #{base_network_forward.1} parent=1 // pred_fallthru
      _
    %v67 = vld [vmem:[#allocation2] sm:$0xff]
    %v68 = vld [vmem:[#allocation5] sm:$0xf]
    %v69 = vld [vmem:[#allocation5 + $0x4] sm:$0xf]
    %v70 = vld [vmem:[#allocation5 + $0x8] sm:$0xf]
    %v71 = vld [vmem:[#allocation5 + $0xc] sm:$0xf]
    %v72 = vld [vmem:[%s2] sm:$0x1]
    %v73 = vpack.c.bf16 %v67, %v67
    %v75 = vlaneseq
    %v76 = vshrl.u32 %v75, 7
    %v77 = vsub.s32 0, %v76
    %v78 = vrot.slane %v72, %v77
    %v84 = vunpack.c.l.b16 %v68
    %v85 = vunpack.c.l.b16 %v69
    %v86 = vunpack.c.l.b16 %v70
    %v87 = vunpack.c.l.b16 %v71
    %v88 = vpack.c.b16 %v85, %v84
    %v89 = vpack.c.b16 %v87, %v86
    %vm92 = vcmask 261120
    %v94 = vsel %vm92, %v73, 0
    %96 = vmatprep.subr.bf16.mxu0 0
    %97 = vmatpush1.bf16.msra.mxu0 %v88
    %98 = vmatprep.subr.bf16.mxu0 0
    %99 = vmatpush1.bf16.msra.mxu0 %v89
    %100 = vmatprep.subr.bf16.mxu0 0
    %101 = vmatpush1.bf16.msra.mxu0 0
    %102 = vmatprep.subr.bf16.mxu0 0
    %103 = vmatpush1.bf16.msra.mxu0 0
    %104 = vmatprep.subr.bf16.mxu0 0
    %105 = vmatpush1.bf16.msra.mxu0 0
    %106 = vmatprep.subr.bf16.mxu0 0
    %107 = vmatpush1.bf16.msra.mxu0 0
    %108 = vmatprep.subr.bf16.mxu0 0
    %109 = vmatpush1.bf16.msra.mxu0 0
    %110 = vmatprep.subr.bf16.mxu0 0
    %111 = vmatpush1.bf16.msra.mxu0 0
    %112 = vmatprep.subr.bf16.mxu0 0
    %113 = vmatpush1.bf16.msra.mxu0 0
    %114 = vmatprep.subr.bf16.mxu0 0
    %115 = vmatpush1.bf16.msra.mxu0 0
    %116 = vmatprep.subr.bf16.mxu0 0
    %117 = vmatpush1.bf16.msra.mxu0 0
    %118 = vmatprep.subr.bf16.mxu0 0
    %119 = vmatpush1.bf16.msra.mxu0 0
    %120 = vmatprep.subr.bf16.mxu0 0
    %121 = vmatpush1.bf16.msra.mxu0 0
    %122 = vmatprep.subr.bf16.mxu0 0
    %123 = vmatpush1.bf16.msra.mxu0 0
    %124 = vmatprep.subr.bf16.mxu0 0
    %125 = vmatpush1.bf16.msra.mxu0 0
    %126 = vmatprep.subr.bf16.mxu0 0
    %127 = vmatpush1.bf16.msra.mxu0 0
    %128 = vmatprep.mubr.bf16.mxu0 0
    %129 = vmatmul.mubr.bf16.gmra.mrb[0].mxu0 %v94
    %v130 = vpop.f32.mrb[0].mxu0
    %v131 = vadd.f32 %v78, %v130
    %v132 = vpop.f32.mrb[0].mxu0
    %v133 = vpop.f32.mrb[0].mxu0
    %v134 = vpop.f32.mrb[0].mxu0
    %135 = vdwg.mxu0
    %v136 = vmax.f32 %v131, 0.0
    %v137 = vld [vmem:[#allocation7] sm:$0xf]
    %v138 = vld [vmem:[#allocation7 + $0x4] sm:$0xf]
    %v139 = vld [vmem:[#allocation7 + $0x8] sm:$0xf]
    %v140 = vld [vmem:[#allocation7 + $0xc] sm:$0xf]
    %v141 = vld [vmem:[%s4] sm:$0x1]
    %v142 = vpack.c.bf16 %v136, %v136
    %v144 = vlaneseq
    %v145 = vshrl.u32 %v144, 7
    %v146 = vsub.s32 0, %v145
    %v147 = vrot.slane %v141, %v146
    %v153 = vunpack.c.l.b16 %v137
    %v154 = vunpack.c.l.b16 %v138
    %v155 = vunpack.c.l.b16 %v139
    %v156 = vunpack.c.l.b16 %v140
    %v157 = vpack.c.b16 %v154, %v153
    %v158 = vpack.c.b16 %v156, %v155
    %v162 = vsel %vm92, %v142, 0
    %164 = vmatprep.subr.bf16.mxu0 0
    %165 = vmatpush1.bf16.msra.mxu0 %v157
    %166 = vmatprep.subr.bf16.mxu0 0
    %167 = vmatpush1.bf16.msra.mxu0 %v158
    %168 = vmatprep.subr.bf16.mxu0 0
    %169 = vmatpush1.bf16.msra.mxu0 0
    %170 = vmatprep.subr.bf16.mxu0 0
    %171 = vmatpush1.bf16.msra.mxu0 0
    %172 = vmatprep.subr.bf16.mxu0 0
    %173 = vmatpush1.bf16.msra.mxu0 0
    %174 = vmatprep.subr.bf16.mxu0 0
    %175 = vmatpush1.bf16.msra.mxu0 0
    %176 = vmatprep.subr.bf16.mxu0 0
    %177 = vmatpush1.bf16.msra.mxu0 0
    %178 = vmatprep.subr.bf16.mxu0 0
    %179 = vmatpush1.bf16.msra.mxu0 0
    %180 = vmatprep.subr.bf16.mxu0 0
    %181 = vmatpush1.bf16.msra.mxu0 0
    %182 = vmatprep.subr.bf16.mxu0 0
    %183 = vmatpush1.bf16.msra.mxu0 0
    %184 = vmatprep.subr.bf16.mxu0 0
    %185 = vmatpush1.bf16.msra.mxu0 0
    %186 = vmatprep.subr.bf16.mxu0 0
    %187 = vmatpush1.bf16.msra.mxu0 0
    %188 = vmatprep.subr.bf16.mxu0 0
    %189 = vmatpush1.bf16.msra.mxu0 0
    %190 = vmatprep.subr.bf16.mxu0 0
    %191 = vmatpush1.bf16.msra.mxu0 0
    %192 = vmatprep.subr.bf16.mxu0 0
    %193 = vmatpush1.bf16.msra.mxu0 0
    %194 = vmatprep.subr.bf16.mxu0 0
    %195 = vmatpush1.bf16.msra.mxu0 0
    %196 = vmatprep.mubr.bf16.mxu0 0
    %197 = vmatmul.mubr.bf16.gmra.mrb[0].mxu0 %v162
    %v198 = vpop.f32.mrb[0].mxu0
    %v199 = vadd.f32 %v147, %v198
    %v200 = vpop.f32.mrb[0].mxu0
    %v201 = vpop.f32.mrb[0].mxu0
    %v202 = vpop.f32.mrb[0].mxu0
    %203 = vdwg.mxu0
    %v204 = vmax.f32 %v199, 0.0
    %v205 = vld [vmem:[%s5] sm:$0xf]
    %v206 = vld [vmem:[%s5 + $0x4] sm:$0xf]
    %v207 = vld [vmem:[%s5 + $0x8] sm:$0xf]
    %v208 = vld [vmem:[%s5 + $0xc] sm:$0xf]
    %v209 = vld [vmem:[%s6] sm:$0x1]
    %v210 = vpack.c.bf16 %v204, %v204
    %v212 = vlaneseq
    %v213 = vshrl.u32 %v212, 7
    %v214 = vsub.s32 0, %v213
    %v215 = vrot.slane %v209, %v214
    %v221 = vunpack.c.l.b16 %v205
    %v222 = vunpack.c.l.b16 %v206
    %v223 = vunpack.c.l.b16 %v207
    %v224 = vunpack.c.l.b16 %v208
    %v225 = vpack.c.b16 %v222, %v221
    %v226 = vpack.c.b16 %v224, %v223
    %v230 = vsel %vm92, %v210, 0
    %232 = vmatprep.subr.bf16.mxu0 0
    %233 = vmatpush1.bf16.msra.mxu0 %v225
    %234 = vmatprep.subr.bf16.mxu0 0
    %235 = vmatpush1.bf16.msra.mxu0 %v226
    %236 = vmatprep.subr.bf16.mxu0 0
    %237 = vmatpush1.bf16.msra.mxu0 0
    %238 = vmatprep.subr.bf16.mxu0 0
    %239 = vmatpush1.bf16.msra.mxu0 0
    %240 = vmatprep.subr.bf16.mxu0 0
    %241 = vmatpush1.bf16.msra.mxu0 0
    %242 = vmatprep.subr.bf16.mxu0 0
    %243 = vmatpush1.bf16.msra.mxu0 0
    %244 = vmatprep.subr.bf16.mxu0 0
    %245 = vmatpush1.bf16.msra.mxu0 0
    %246 = vmatprep.subr.bf16.mxu0 0
    %247 = vmatpush1.bf16.msra.mxu0 0
    %248 = vmatprep.subr.bf16.mxu0 0
    %249 = vmatpush1.bf16.msra.mxu0 0
    %250 = vmatprep.subr.bf16.mxu0 0
    %251 = vmatpush1.bf16.msra.mxu0 0
    %252 = vmatprep.subr.bf16.mxu0 0
    %253 = vmatpush1.bf16.msra.mxu0 0
    %254 = vmatprep.subr.bf16.mxu0 0
    %255 = vmatpush1.bf16.msra.mxu0 0
    %256 = vmatprep.subr.bf16.mxu0 0
    %257 = vmatpush1.bf16.msra.mxu0 0
    %258 = vmatprep.subr.bf16.mxu0 0
    %259 = vmatpush1.bf16.msra.mxu0 0
    %260 = vmatprep.subr.bf16.mxu0 0
    %261 = vmatpush1.bf16.msra.mxu0 0
    %262 = vmatprep.subr.bf16.mxu0 0
    %263 = vmatpush1.bf16.msra.mxu0 0
    %264 = vmatprep.mubr.bf16.mxu0 0
    %265 = vmatmul.mubr.bf16.gmra.mrb[0].mxu0 %v230
    %v266 = vpop.f32.mrb[0].mxu0
    %v267 = vadd.f32 %v215, %v266
    %v268 = vpop.f32.mrb[0].mxu0
    %v269 = vpop.f32.mrb[0].mxu0
    %v270 = vpop.f32.mrb[0].mxu0
    %271 = vdwg.mxu0
    %272 = vst.msk [vmem:[#allocation8] sm:$0xff] %vm92, %v267
    // Predicated region
    $region42: #{base_network_forward.1} parent=1 // pred_check
      _
    $region43: #{base_network_forward.1} parent=1 // pred_check_branch
      %274 = sbr.rel (0) target = $region45
    $region44: #{base_network_forward.1} parent=1 // pred_region
      %s276 = ssub.s32 128, 128
      %277 = vsyncadd [#allocation4], %s276
      %s279 = sshll.u32 [#allocation8], 4
      %s280 = int_to_ptr.vmem [resolvable:$true] %s279
      %282 = dma.vmem_to_hbm [thread:$0]  %s280, 128, %s7, [#allocation4]
    $region45: #{base_network_forward.1} parent=1 // pred_fallthru
      _
    // Predicated region
    $region46: #{base_network_forward.1} parent=1 // pred_check
      _
    $region47: #{base_network_forward.1} parent=1 // pred_check_branch
      %284 = sbr.rel (0) target = $region49
    $region48: #{base_network_forward.1} parent=1 // pred_region
      %285 = dma.done [#allocation4], 128
    $region49: #{base_network_forward.1} parent=1 // pred_fallthru
      _
    %286 = vsyncpa [#allocation3], 1
    %287 = vsyncpa [#allocation6], 1
    %288 = vsyncpa [#allocation4], 1

</llo_original>
